<compile_context>
chip_gen: v7x
topology: tpu7x:2x2x1
jax: 0.10.0
libtpu: 0.0.40
codegen_flags: <defaults>
</compile_context>

<pallas_src>
import functools

import jax
import jax.numpy as jnp
from jax import lax
from jax.experimental import pallas as pl
from jax.experimental.pallas import tpu as pltpu


def _round_up(x, m):
    return ((x + m - 1) // m) * m


def _triplet_loss_kernel(a_ref, p_ref, n_ref, o_ref, acc_ref, *,
                         margin, eps, total_n, tile_n, tiles_per_part,
                         needs_mask):
    part = pl.program_id(0)          # "parallel" axis (megacore split)
    step = pl.program_id(1)          # "arbitrary" reduction axis (batch tiles)

    @pl.when(step == 0)
    def _init():
        acc_ref[...] = jnp.zeros_like(acc_ref)

    a = a_ref[...].astype(jnp.float32)
    p = p_ref[...].astype(jnp.float32)
    n = n_ref[...].astype(jnp.float32)

    # F.pairwise_distance(x1, x2, p=2, eps=1e-6) == ||x1 - x2 + eps||_2 over dim=-1
    dpos = jnp.sqrt(jnp.sum((a - p + eps) ** 2, axis=-1, keepdims=True))  # (tile_n, 1)
    dneg = jnp.sqrt(jnp.sum((a - n + eps) ** 2, axis=-1, keepdims=True))  # (tile_n, 1)
    losses = jnp.maximum(dpos - dneg + margin, 0.0)                       # relu

    if needs_mask:
        # Zero rows beyond the real batch (remainder rows / clamped duplicate
        # tiles).  Only emitted when statically required.
        logical_block = part * tiles_per_part + step
        row0 = logical_block * tile_n
        rows = row0 + lax.broadcasted_iota(jnp.int32, (tile_n, 1), 0)
        losses = jnp.where(rows < total_n, losses, 0.0)

    # Scalar running sum for this core (cheap: one tiny VMEM read-modify-write
    # per step instead of a per-row accumulator).
    acc_ref[...] += jnp.sum(losses, axis=(0, 1), keepdims=True)

    # Per-core partial sum, stored once at the last reduction step.
    @pl.when(step == tiles_per_part - 1)
    def _finalize():
        o_ref[...] = acc_ref[...].reshape(1, 1, 1)


def triplet_loss(anchor, positive, negative, margin=1.0, eps=1e-6):
    """Pallas TPU implementation of TripletLoss.forward. Returns a scalar."""
    N, D = anchor.shape
    itemsize = jnp.dtype(anchor.dtype).itemsize
    row_align = 16 if anchor.dtype == jnp.bfloat16 else 8

    # Batch-tile size: 3 inputs x 2 pipeline buffers must fit an ~8 MiB input
    # budget (safe under v5e's 16 MiB scoped default and v7x's 64 MiB VMEM,
    # even with lane padding for narrow D).
    input_budget = 8 * 1024 * 1024
    max_rows = max(row_align, input_budget // (3 * 2 * max(D, 1) * itemsize))
    tile_n = _round_up(max(1, min(N, 1024, max_rows)), row_align)

    num_blocks = pl.cdiv(N, tile_n)
    # Split tiles across the 2 TensorCores (v7x megacore) when there is enough work.
    num_parts = 2 if num_blocks >= 2 else 1
    tiles_per_part = pl.cdiv(num_blocks, num_parts)
    needs_clamp = num_parts * tiles_per_part > num_blocks
    needs_mask = needs_clamp or (N % tile_n != 0)

    def in_map(c, i):
        blk = c * tiles_per_part + i
        if needs_clamp:
            blk = jnp.minimum(blk, num_blocks - 1)   # keep every DMA in bounds
        return (blk, 0)

    kernel = functools.partial(
        _triplet_loss_kernel,
        margin=margin, eps=eps, total_n=N,
        tile_n=tile_n, tiles_per_part=tiles_per_part,
        needs_mask=needs_mask)

    cost = pl.CostEstimate(
        flops=8 * N * D,                 # diffs, squares, adds, relu
        transcendentals=2 * N,           # two sqrts per row
        bytes_accessed=3 * N * D * itemsize + 4 * num_parts)

    partial_sums = pl.pallas_call(
        kernel,
        out_shape=jax.ShapeDtypeStruct((num_parts, 1, 1), jnp.float32),
        grid_spec=pltpu.PrefetchScalarGridSpec(
            num_scalar_prefetch=0,
            grid=(num_parts, tiles_per_part),
            in_specs=[
                pl.BlockSpec((tile_n, D), in_map),
                pl.BlockSpec((tile_n, D), in_map),
                pl.BlockSpec((tile_n, D), in_map),
            ],
            out_specs=pl.BlockSpec((1, 1, 1), lambda c, i: (c, 0, 0)),
            scratch_shapes=[pltpu.VMEM((1, 1), jnp.float32)],
        ),
        compiler_params=pltpu.CompilerParams(
            dimension_semantics=("parallel", "arbitrary"),
            vmem_limit_bytes=32 * 1024 * 1024),
        cost_estimate=cost,
    )(anchor, positive, negative)

    # Final combine of per-core partial sums; divide by the *global* batch size.
    return jnp.sum(partial_sums) / N


def _reference(anchor, positive, negative, margin=1.0, eps=1e-6):
    dp = jnp.sqrt(jnp.sum((anchor - positive + eps) ** 2, axis=-1))
    dn = jnp.sqrt(jnp.sum((anchor - negative + eps) ** 2, axis=-1))
    return jnp.mean(jnp.maximum(dp - dn + margin, 0.0))


if __name__ == "__main__":
    key = jax.random.PRNGKey(0)
    k1, k2, k3 = jax.random.split(key, 3)

    # Small primary example: batch=8, embedding dim=32.
    N, D = 8, 32
    anchor = jax.random.normal(k1, (N, D), dtype=jnp.float32)
    positive = jax.random.normal(k2, (N, D), dtype=jnp.float32)
    negative = jax.random.normal(k3, (N, D), dtype=jnp.float32)

    loss = triplet_loss(anchor, positive, negative, margin=1.0)
    jax.block_until_ready(loss)
    ref = _reference(anchor, positive, negative, margin=1.0)
    assert jnp.allclose(loss, ref, rtol=1e-5, atol=1e-5), (loss, ref)

    # Remainder-row (masking) path.
    N2, D2 = 300, 64
    a2 = jax.random.normal(k1, (N2, D2), dtype=jnp.float32)
    p2 = jax.random.normal(k2, (N2, D2), dtype=jnp.float32)
    n2 = jax.random.normal(k3, (N2, D2), dtype=jnp.float32)
    loss2 = triplet_loss(a2, p2, n2, margin=1.0)
    jax.block_until_ready(loss2)
    ref2 = _reference(a2, p2, n2, margin=1.0)
    assert jnp.allclose(loss2, ref2, rtol=1e-5, atol=1e-5), (loss2, ref2)

    # Multi-tile + 2-core split + clamped-duplicate-tile path.
    N3, D3 = 2500, 128
    a3 = jax.random.normal(k1, (N3, D3), dtype=jnp.float32)
    p3 = jax.random.normal(k2, (N3, D3), dtype=jnp.float32)
    n3 = jax.random.normal(k3, (N3, D3), dtype=jnp.float32)
    loss3 = triplet_loss(a3, p3, n3, margin=1.0)
    jax.block_until_ready(loss3)
    ref3 = _reference(a3, p3, n3, margin=1.0)
    assert jnp.allclose(loss3, ref3, rtol=1e-5, atol=1e-5), (loss3, ref3)

    print("KERNEL_OK")
</pallas_src>

<mosaic_0001>
module attributes {stable_mosaic.version = 11 : i64} {
  func.func @_triplet_loss_kernel(%arg0: i32, %arg1: i32, %arg2: memref<8x32xf32, #tpu.memory_space<vmem>>, %arg3: memref<8x32xf32, #tpu.memory_space<vmem>>, %arg4: memref<8x32xf32, #tpu.memory_space<vmem>>, %arg5: memref<1x1x1xf32, #tpu.memory_space<vmem>>, %arg6: memref<1x1xf32, #tpu.memory_space<vmem>>) attributes {dimension_semantics = [#tpu.dimension_semantics<parallel>, #tpu.dimension_semantics<arbitrary>], iteration_bounds = array<i64: 1, 1>, scalar_prefetch = 0 : i64, scratch_operands = 1 : i64, tpu.core_type = #tpu.core_type<tc>, window_params = [{transform_indices = @transform_0, window_bounds = array<i64: 8, 32>}, {transform_indices = @transform_1, window_bounds = array<i64: 8, 32>}, {transform_indices = @transform_2, window_bounds = array<i64: 8, 32>}, {transform_indices = @transform_3, window_bounds = array<i64: 1, 1, 1>}]} {
    %c0_i32 = arith.constant 0 : i32
    %0 = arith.cmpi eq, %arg1, %c0_i32 : i32
    %1 = arith.extui %0 : i1 to i32
    %c0_i32_0 = arith.constant 0 : i32
    %2 = arith.cmpi ne, %1, %c0_i32_0 : i32
    scf.if %2 {
      %cst_18 = arith.constant 0.000000e+00 : f32
      %36 = vector.broadcast %cst_18 : f32 to vector<1x1xf32>
      %c0_19 = arith.constant 0 : index
      %c0_20 = arith.constant 0 : index
      %37 = vector.load %arg6[%c0_19, %c0_20] : memref<1x1xf32, #tpu.memory_space<vmem>>, vector<1x1xf32>
      tpu.vector_store %arg6[%c0_19, %c0_20], %36 {strides = array<i32>} : memref<1x1xf32, #tpu.memory_space<vmem>>, vector<1x1xf32>,
    } else {
    }
    %c0 = arith.constant 0 : index
    %c0_1 = arith.constant 0 : index
    %3 = vector.load %arg2[%c0, %c0_1] : memref<8x32xf32, #tpu.memory_space<vmem>>, vector<8x32xf32>
    %c0_2 = arith.constant 0 : index
    %c0_3 = arith.constant 0 : index
    %4 = vector.load %arg3[%c0_2, %c0_3] : memref<8x32xf32, #tpu.memory_space<vmem>>, vector<8x32xf32>
    %c0_4 = arith.constant 0 : index
    %c0_5 = arith.constant 0 : index
    %5 = vector.load %arg4[%c0_4, %c0_5] : memref<8x32xf32, #tpu.memory_space<vmem>>, vector<8x32xf32>
    %6 = arith.subf %3, %4 : vector<8x32xf32>
    %cst = arith.constant 9.99999997E-7 : f32
    %7 = vector.broadcast %cst : f32 to vector<8x32xf32>
    %8 = arith.addf %6, %7 : vector<8x32xf32>
    %9 = arith.mulf %8, %8 : vector<8x32xf32>
    %cst_6 = arith.constant dense<0.000000e+00> : vector<8xf32>
    %10 = vector.multi_reduction <add>, %9, %cst_6 [1] : vector<8x32xf32> to vector<8xf32>
    %11 = vector.shape_cast %10 : vector<8xf32> to vector<8x1xf32>
    %12 = math.sqrt %11 : vector<8x1xf32>
    %13 = arith.subf %3, %5 : vector<8x32xf32>
    %cst_7 = arith.constant 9.99999997E-7 : f32
    %14 = vector.broadcast %cst_7 : f32 to vector<8x32xf32>
    %15 = arith.addf %13, %14 : vector<8x32xf32>
    %16 = arith.mulf %15, %15 : vector<8x32xf32>
    %cst_8 = arith.constant dense<0.000000e+00> : vector<8xf32>
    %17 = vector.multi_reduction <add>, %16, %cst_8 [1] : vector<8x32xf32> to vector<8xf32>
    %18 = vector.shape_cast %17 : vector<8xf32> to vector<8x1xf32>
    %19 = math.sqrt %18 : vector<8x1xf32>
    %20 = arith.subf %12, %19 : vector<8x1xf32>
    %cst_9 = arith.constant 1.000000e+00 : f32
    %21 = vector.broadcast %cst_9 : f32 to vector<8x1xf32>
    %22 = arith.addf %20, %21 : vector<8x1xf32>
    %cst_10 = arith.constant 0.000000e+00 : f32
    %23 = vector.broadcast %cst_10 : f32 to vector<8x1xf32>
    %24 = arith.maximumf %22, %23 : vector<8x1xf32>
    %c0_11 = arith.constant 0 : index
    %c0_12 = arith.constant 0 : index
    %25 = vector.load %arg6[%c0_11, %c0_12] : memref<1x1xf32, #tpu.memory_space<vmem>>, vector<1x1xf32>
    %26 = vector.shape_cast %24 : vector<8x1xf32> to vector<1x8x1xf32>
    %cst_13 = arith.constant dense<0.000000e+00> : vector<1xf32>
    %27 = vector.multi_reduction <add>, %26, %cst_13 [1, 2] : vector<1x8x1xf32> to vector<1xf32>
    %28 = vector.shape_cast %27 : vector<1xf32> to vector<1x1x1xf32>
    %29 = vector.extract %28[0, 0, 0] : f32 from vector<1x1x1xf32>
    %30 = vector.broadcast %29 : f32 to vector<1x1xf32>
    %31 = arith.addf %25, %30 : vector<1x1xf32>
    %c0_14 = arith.constant 0 : index
    %c0_15 = arith.constant 0 : index
    %32 = vector.load %arg6[%c0_14, %c0_15] : memref<1x1xf32, #tpu.memory_space<vmem>>, vector<1x1xf32>
    tpu.vector_store %arg6[%c0_14, %c0_15], %31 {strides = array<i32>} : memref<1x1xf32, #tpu.memory_space<vmem>>, vector<1x1xf32>,
    %c0_i32_16 = arith.constant 0 : i32
    %33 = arith.cmpi eq, %arg1, %c0_i32_16 : i32
    %34 = arith.extui %33 : i1 to i32
    %c0_i32_17 = arith.constant 0 : i32
    %35 = arith.cmpi ne, %34, %c0_i32_17 : i32
    scf.if %35 {
      %c0_18 = arith.constant 0 : index
      %c0_19 = arith.constant 0 : index
      %36 = vector.load %arg6[%c0_18, %c0_19] : memref<1x1xf32, #tpu.memory_space<vmem>>, vector<1x1xf32>
      %37 = vector.shape_cast %36 : vector<1x1xf32> to vector<1x1x1xf32>
      %c0_20 = arith.constant 0 : index
      %c0_21 = arith.constant 0 : index
      %c0_22 = arith.constant 0 : index
      %38 = vector.load %arg5[%c0_20, %c0_21, %c0_22] : memref<1x1x1xf32, #tpu.memory_space<vmem>>, vector<1x1x1xf32>
      tpu.vector_store %arg5[%c0_20, %c0_21, %c0_22], %37 {strides = array<i32>} : memref<1x1x1xf32, #tpu.memory_space<vmem>>, vector<1x1x1xf32>,
    } else {
    }
    return
  }
  func.func @transform_0(%arg0: i32, %arg1: i32) -> (i32, i32) {
    %c1_i32 = arith.constant 1 : i32
    %0 = arith.muli %arg0, %c1_i32 : i32
    %1 = arith.addi %0, %arg1 : i32
    %c0_i32 = arith.constant 0 : i32
    %c0_i32_0 = arith.constant 0 : i32
    return %1, %c0_i32 : i32, i32
  }
  func.func @transform_1(%arg0: i32, %arg1: i32) -> (i32, i32) {
    %c1_i32 = arith.constant 1 : i32
    %0 = arith.muli %arg0, %c1_i32 : i32
    %1 = arith.addi %0, %arg1 : i32
    %c0_i32 = arith.constant 0 : i32
    %c0_i32_0 = arith.constant 0 : i32
    return %1, %c0_i32 : i32, i32
  }
  func.func @transform_2(%arg0: i32, %arg1: i32) -> (i32, i32) {
    %c1_i32 = arith.constant 1 : i32
    %0 = arith.muli %arg0, %c1_i32 : i32
    %1 = arith.addi %0, %arg1 : i32
    %c0_i32 = arith.constant 0 : i32
    %c0_i32_0 = arith.constant 0 : i32
    return %1, %c0_i32 : i32, i32
  }
  func.func @transform_3(%arg0: i32, %arg1: i32) -> (i32, i32, i32) {
    %c0_i32 = arith.constant 0 : i32
    %c0_i32_0 = arith.constant 0 : i32
    %c0_i32_1 = arith.constant 0 : i32
    return %arg0, %c0_i32, %c0_i32_0 : i32, i32, i32
  }
}

</mosaic_0001>

<llo_original>
// kernel: tpu_custom_call.1
$region0: #{tpu_custom_call.1}
  #allocation0 [shape = 'u32[]', space=smem, size = 0x4, offset = 0x4, fixed_abs, tag = 'smem constant byte address 0x4 - core index']
  #allocation1 [shape = 'u32[144,128]{1,0:T(1,128)}', space=vmem, size = 0x12000, scoped, tag = 'internal scratch']
  #allocation2 [shape = 'f32[1,1]{1,0:T(1,128)}', space=vmem, size = 0x200, scoped, tag = 'scratch operand']
  %s0 = inlined_call_operand.hbm [shape: f32[8,32], index: 0, kind: input, shape index: {}]
  %s1 = inlined_call_operand.hbm [shape: f32[8,32], index: 1, kind: input, shape index: {}]
  %s2 = inlined_call_operand.hbm [shape: f32[8,32], index: 2, kind: input, shape index: {}]
  %s3 = inlined_call_operand.hbm [shape: f32[1,1,1], index: 3, kind: output, shape index: {}]
  %s4 = sld [smem:[#allocation0]]
  $region42: #{tpu_custom_call.1} parent=0
    _
  %s6 = ssub.s32 1, %s4
  %s7 = scalar_select 0, %s6, %s4
  $region1: #{tpu_custom_call.1} parent=0
    #allocation3 [shape = 'u8[4096]{0}', space=vmem, size = 0x1000, scoped, tag = 'input window, operand 0, single buffered']
    #allocation4 [shape = 's32[1]{0}', space=sflag, size = 0x4, scoped, tag = 'scoped memory for tpu_custom_call.1']
    #allocation5 [shape = 's32[1]{0}', space=sflag, size = 0x4, scoped, tag = 'scoped memory for tpu_custom_call.1']
    #allocation6 [shape = 'u8[4096]{0}', space=vmem, size = 0x1000, scoped, tag = 'input window, operand 1, single buffered']
    #allocation7 [shape = 's32[1]{0}', space=sflag, size = 0x4, scoped, tag = 'scoped memory for tpu_custom_call.1']
    #allocation8 [shape = 'u8[4096]{0}', space=vmem, size = 0x1000, scoped, tag = 'input window, operand 2, single buffered']
    #allocation9 [shape = 'u8[512]{0}', space=vmem, size = 0x400, scoped, tag = 'output window, operand 0, single buffered']
    %8 = vsyncpa [#allocation4], 0
    %9 = vsyncpa [#allocation7], 0
    %10 = vsyncpa [#allocation5], 0
    // Predicated region
    $region2: #{tpu_custom_call.1} parent=1 // pred_check
      _
    $region3: #{tpu_custom_call.1} parent=1 // pred_check_branch
      %12 = sbr.rel (0) target = $region5
    $region4: #{tpu_custom_call.1} parent=1 // pred_region
      %s13 = sadd.s32 0, 0
      %s15 = ssub.s32 128, 128
      %16 = vsyncadd [#allocation4], %s15
      %s17 = smul.addr %s13, 128
      %s18 = scalar_lea.hbm %s0, %s17
      %s20 = sshll.u32 [#allocation3], 4
      %s21 = int_to_ptr.vmem [resolvable:$true] %s20
      %23 = dma.hbm_to_vmem [thread:$0]  %s18, 128, %s21, [#allocation4]
    $region5: #{tpu_custom_call.1} parent=1 // pred_fallthru
      _
    // Predicated region
    $region6: #{tpu_custom_call.1} parent=1 // pred_check
      _
    $region7: #{tpu_custom_call.1} parent=1 // pred_check_branch
      %25 = sbr.rel (0) target = $region9
    $region8: #{tpu_custom_call.1} parent=1 // pred_region
      %s26 = sadd.s32 0, 0
      %s28 = ssub.s32 128, 128
      %29 = vsyncadd [#allocation7], %s28
      %s30 = smul.addr %s26, 128
      %s31 = scalar_lea.hbm %s1, %s30
      %s33 = sshll.u32 [#allocation6], 4
      %s34 = int_to_ptr.vmem [resolvable:$true] %s33
      %36 = dma.hbm_to_vmem [thread:$0]  %s31, 128, %s34, [#allocation7]
    $region9: #{tpu_custom_call.1} parent=1 // pred_fallthru
      _
    // Predicated region
    $region10: #{tpu_custom_call.1} parent=1 // pred_check
      _
    $region11: #{tpu_custom_call.1} parent=1 // pred_check_branch
      %38 = sbr.rel (0) target = $region13
    $region12: #{tpu_custom_call.1} parent=1 // pred_region
      %s39 = sadd.s32 0, 0
      %s41 = ssub.s32 128, 128
      %42 = vsyncadd [#allocation7], %s41
      %s43 = smul.addr %s39, 128
      %s44 = scalar_lea.hbm %s2, %s43
      %s46 = sshll.u32 [#allocation8], 4
      %s47 = int_to_ptr.vmem [resolvable:$true] %s46
      %49 = dma.hbm_to_vmem [thread:$0]  %s44, 128, %s47, [#allocation7]
    $region13: #{tpu_custom_call.1} parent=1 // pred_fallthru
      _
    // Predicated region
    $region14: #{tpu_custom_call.1} parent=1 // pred_check
      _
    $region15: #{tpu_custom_call.1} parent=1 // pred_check_branch
      %51 = sbr.rel (0) target = $region17
    $region16: #{tpu_custom_call.1} parent=1 // pred_region
      %52 = dma.done [#allocation4], 128
    $region17: #{tpu_custom_call.1} parent=1 // pred_fallthru
      _
    // Predicated region
    $region18: #{tpu_custom_call.1} parent=1 // pred_check
      _
    $region19: #{tpu_custom_call.1} parent=1 // pred_check_branch
      %54 = sbr.rel (0) target = $region21
    $region20: #{tpu_custom_call.1} parent=1 // pred_region
      %55 = dma.done [#allocation7], 128
    $region21: #{tpu_custom_call.1} parent=1 // pred_fallthru
      _
    // Predicated region
    $region22: #{tpu_custom_call.1} parent=1 // pred_check
      _
    $region23: #{tpu_custom_call.1} parent=1 // pred_check_branch
      %57 = sbr.rel (0) target = $region25
    $region24: #{tpu_custom_call.1} parent=1 // pred_region
      %58 = dma.done [#allocation7], 128
    $region25: #{tpu_custom_call.1} parent=1 // pred_fallthru
      _
    %s59 = sadd.s32 0, 0
    %s60 = sadd.s32 0, 0
    %s61 = sadd.s32 0, 0
    %p62 = scmp.eq.s32.totalorder 0, 0
    // Predicated region
    $region26: #{tpu_custom_call.1} parent=1 // pred_check
      %p63 = pneg %p62
    $region27: #{tpu_custom_call.1} parent=1 // pred_check_branch
      %65 = sbr.rel (%p63) target = $region29
    $region28: #{tpu_custom_call.1} parent=1 // pred_region
      %vm66 = vcmask 0
      %67 = vst.msk [vmem:[#allocation2] sm:$0x1] %vm66, 0.0
    $region29: #{tpu_custom_call.1} parent=1 // pred_fallthru
      _
    %v68 = vld [vmem:[#allocation3] sm:$0xff]
    %v69 = vld [vmem:[#allocation6] sm:$0xff]
    %v70 = vld [vmem:[#allocation8] sm:$0xff]
    %v71 = vsub.f32 %v68, %v69
    %v72 = vadd.f32 %v71, 1e-06
    %v73 = vmul.f32 %v72, %v72
    %vm74 = vcmask 261120
    %v75 = vsel %vm74, %v73, 0.0
    %76 = vadd.xlane.f32.xlu0 %v75
    %v77 = vpop.xlane.xlu0 %76
    %v78 = vrsqrt.pop %v77
    %v79 = vmul.f32 %v77, %v78
    %vm80 = vcmp.eq.f32.partialorder %v77, inf
    %v81 = vsel %vm80, %v77, %v79
    %vm82 = vcmp.eq.f32.partialorder %v77, 0.0
    %v83 = vand.u32 %v77, 2147483648
    %v84 = vsel %vm82, %v83, %v81
    %v85 = vsub.f32 %v68, %v70
    %v86 = vadd.f32 %v85, 1e-06
    %v87 = vmul.f32 %v86, %v86
    %v88 = vsel %vm74, %v87, 0.0
    %89 = vadd.xlane.f32.xlu0 %v88
    %v90 = vpop.xlane.xlu0 %89
    %v91 = vrsqrt.pop %v90
    %v92 = vmul.f32 %v90, %v91
    %vm93 = vcmp.eq.f32.partialorder %v90, inf
    %v94 = vsel %vm93, %v90, %v92
    %vm95 = vcmp.eq.f32.partialorder %v90, 0.0
    %v96 = vand.u32 %v90, 2147483648
    %v97 = vsel %vm95, %v96, %v94
    %v98 = vsub.f32 %v84, %v97
    %v99 = vadd.f32 %v98, 1.0
    %v100 = vmax.f32 %v99, 0.0
    %v101 = vld [vmem:[#allocation2] sm:$0x1]
    %vm102 = vcmask 7168
    %v103 = vsel %vm102, %v100, 0.0
    %104 = vadd.xlane.f32.xlu0 %v103
    %v105 = vpop.xlane.xlu0 %104
    %v106 = vrot.slane %v105, 4
    %v107 = vadd.f32 %v105, %v106
    %v108 = vrot.slane %v107, 2
    %v109 = vadd.f32 %v107, %v108
    %v110 = vrot.slane %v109, 1
    %v111 = vadd.f32 %v109, %v110
    %s112 = vtos %v111
    %v113 = vstv %s112
    %v114 = vadd.f32 %v101, %v113
    %vm115 = vcmask 0
    %116 = vst.msk [vmem:[#allocation2] sm:$0x1] %vm115, %v114
    // Predicated region
    $region30: #{tpu_custom_call.1} parent=1 // pred_check
      %p117 = pneg %p62
    $region31: #{tpu_custom_call.1} parent=1 // pred_check_branch
      %119 = sbr.rel (%p117) target = $region33
    $region32: #{tpu_custom_call.1} parent=1 // pred_region
      %v120 = vld [vmem:[#allocation2] sm:$0x1]
      %121 = vst.msk [vmem:[#allocation9] sm:$0x1] %vm115, %v120
    $region33: #{tpu_custom_call.1} parent=1 // pred_fallthru
      _
    // Predicated region
    $region34: #{tpu_custom_call.1} parent=1 // pred_check
      _
    $region35: #{tpu_custom_call.1} parent=1 // pred_check_branch
      %123 = sbr.rel (0) target = $region37
    $region36: #{tpu_custom_call.1} parent=1 // pred_region
      %s125 = ssub.s32 16, 16
      %126 = vsyncadd [#allocation5], %s125
      %s128 = sshll.u32 [#allocation9], 4
      %s129 = int_to_ptr.vmem [resolvable:$true] %s128
      %131 = dma.vmem_to_hbm [thread:$0]  %s129, 16, %s3, [#allocation5]
    $region37: #{tpu_custom_call.1} parent=1 // pred_fallthru
      _
    // Predicated region
    $region38: #{tpu_custom_call.1} parent=1 // pred_check
      _
    $region39: #{tpu_custom_call.1} parent=1 // pred_check_branch
      %133 = sbr.rel (0) target = $region41
    $region40: #{tpu_custom_call.1} parent=1 // pred_region
      %134 = dma.done [#allocation5], 16
    $region41: #{tpu_custom_call.1} parent=1 // pred_fallthru
      _
    %135 = vsyncpa [#allocation4], 1
    %136 = vsyncpa [#allocation7], 1
    %137 = vsyncpa [#allocation5], 1

</llo_original>
